<compile_context>
chip_gen: v7x
topology: tpu7x:2x2x1
jax: 0.10.0
libtpu: 0.0.40
codegen_flags: <defaults>
</compile_context>

<pallas_src>
import functools
import math

import numpy as np
import jax
import jax.numpy as jnp
from jax.experimental import pallas as pl
from jax.experimental.pallas import tpu as pltpu

ALPHA_PRELU = 0.25            # torch.nn.PReLU default init
ALPHA_LRELU = 0.2             # LeakyReLU slope used by FNet
ACT_DTYPE = jnp.bfloat16      # inter-layer activation dtype (halves HBM traffic)
SINGLE_K_MAX = 4096           # largest contracting dim handled without K tiling
DIRECT_VMEM_BUDGET = 40 * 1024 * 1024
VMEM_LIMIT_CAP = 48 * 1024 * 1024   # v7x has 64 MiB VMEM / TC; leave headroom


def _round_up(v, m):
    return ((v + m - 1) // m) * m


def _fit_last(a, n):
    """Pad (zeros) or slice the last axis of `a` to length n."""
    cur = a.shape[-1]
    if cur < n:
        return jnp.pad(a, [(0, 0)] * (a.ndim - 1) + [(0, n - cur)])
    if cur > n:
        return a[..., :n]
    return a


def _vmem_limit(nbytes):
    return int(min(max(nbytes + (8 << 20), 16 << 20), VMEM_LIMIT_CAP))


def _epilogue(y, act, alpha, out_scale, r_ref, out_dtype):
    # f32 elementwise epilogue (v5e has no bf16 VALU); only the store is narrow.
    if act in ("prelu", "lrelu"):
        y = jnp.where(y >= 0, y, jnp.float32(alpha) * y)
    elif act == "tanh":
        y = jnp.tanh(y)
    if out_scale != 1.0:
        y = jnp.float32(out_scale) * y
    if r_ref is not None:
        y = y + r_ref[...].astype(jnp.float32)
    return y.astype(out_dtype)


# ----------------------------------------------------------------------------
# Direct stride-1 conv kernel: kh*kw shifted in-VMEM views, no HBM patch tensor
# ----------------------------------------------------------------------------
def _direct_conv_kernel(tap_offs, mout, act, alpha, out_scale, has_res, *refs):
    if has_res:
        w_ref, x_ref, b_ref, r_ref, o_ref = refs
    else:
        w_ref, x_ref, b_ref, o_ref = refs
        r_ref = None
    acc = None
    for t, off in enumerate(tap_offs):
        xt = x_ref[:, off:off + mout]          # (Cin_p, Mout) shifted view (VMEM)
        d = jnp.dot(w_ref[t], xt, preferred_element_type=jnp.float32)
        acc = d if acc is None else acc + d
    y = acc + b_ref[...]                        # bias broadcast over lanes
    o_ref[...] = _epilogue(y, act, alpha, out_scale, r_ref, o_ref.dtype)


def direct_conv(x, w, b, pads, act, alpha, out_scale, residual, out_dtype):
    """Stride-1 conv computed in frame coordinates.

    The zero-padded input is flattened to (Cin_p, Min) with row stride Wp; tap
    (i, j) is the static lane offset i*Wp + j.  The output is produced in the
    same frame layout and un-framed outside (one strided slice).
    NOTE: with Cout in the 8..256 range these layers stay HBM-bound; the point
    of this path is minimizing bytes moved, not MXU occupancy.
    """
    B, Cin, H, W = x.shape
    Cout, _, kh, kw = w.shape
    (pt, pb), (plf, prt) = pads
    Hp, Wp = H + pt + pb, W + plf + prt
    Ho, Wo = Hp - kh + 1, Wp - kw + 1

    Cp = _round_up(Cout, 16)
    Ci = _round_up(Cin, 16)
    m_valid = (Ho - 1) * Wp + Wo
    Mout = _round_up(m_valid, 128)
    max_off = (kh - 1) * Wp + (kw - 1)
    Min = _round_up(Mout + max_off, 128)

    xp = jnp.pad(x.astype(ACT_DTYPE),
                 ((0, 0), (0, Ci - Cin), (pt, pb), (plf, prt)))
    x_flat = _fit_last(xp.reshape(B, Ci, Hp * Wp), Min)

    w_taps = jnp.pad(jnp.transpose(w, (2, 3, 0, 1)).reshape(kh * kw, Cout, Cin),
                     ((0, 0), (0, Cp - Cout), (0, Ci - Cin))).astype(ACT_DTYPE)
    b_p = jnp.pad(b.astype(jnp.float32), (0, Cp - Cout)).reshape(Cp, 1)

    inputs = [w_taps, x_flat, b_p]
    in_specs = [
        pl.BlockSpec((kh * kw, Cp, Ci), lambda bb: (0, 0, 0)),
        pl.BlockSpec((None, Ci, Min), lambda bb: (bb, 0, 0)),
        pl.BlockSpec((Cp, 1), lambda bb: (0, 0)),
    ]
    has_res = residual is not None
    if has_res:
        # Residual (output coords) is scattered into the frame layout so the add
        # stays fused in the epilogue.
        r = jnp.pad(residual, ((0, 0), (0, Cp - Cout), (0, 0), (0, Wp - Wo)))
        r = _fit_last(r.reshape(B, Cp, Ho * Wp), Mout)
        inputs.append(r)
        in_specs.append(pl.BlockSpec((None, Cp, Mout), lambda bb: (bb, 0, 0)))

    tap_offs = tuple(i * Wp + j for i in range(kh) for j in range(kw))
    kernel = functools.partial(_direct_conv_kernel, tap_offs, Mout, act,
                               float(alpha), float(out_scale), has_res)
    out_isz = np.dtype(out_dtype).itemsize
    res_isz = np.dtype(residual.dtype).itemsize if has_res else 0
    tile_bytes = (2 * (Ci * Min * 2 + Cp * Mout * out_isz + Cp * Mout * res_isz)
                  + kh * kw * Cp * Ci * 2)
    out = pl.pallas_call(
        kernel,
        out_shape=jax.ShapeDtypeStruct((B, Cp, Mout), out_dtype),
        grid=(B,),
        in_specs=in_specs,
        out_specs=pl.BlockSpec((None, Cp, Mout), lambda bb: (bb, 0, 0)),
        compiler_params=pltpu.CompilerParams(
            dimension_semantics=("parallel",),
            vmem_limit_bytes=_vmem_limit(tile_bytes)),
    )(*inputs)

    # Frame layout -> (B, Cout, Ho, Wo) (single strided slice).
    out = _fit_last(out[:, :Cout, :], Ho * Wp).reshape(B, Cout, Ho, Wp)
    return out[:, :, :, :Wo]


# ----------------------------------------------------------------------------
# Patch-GEMM kernels (1x1 convs, strided convs, very large K fallback)
# ----------------------------------------------------------------------------
def _gemm_kernel_single(act, alpha, out_scale, has_res, *refs):
    if has_res:
        w_ref, p_ref, b_ref, r_ref, o_ref = refs
    else:
        w_ref, p_ref, b_ref, o_ref = refs
        r_ref = None
    y = jnp.dot(w_ref[...], p_ref[...], preferred_element_type=jnp.float32)
    y = y + b_ref[...]
    o_ref[...] = _epilogue(y, act, alpha, out_scale, r_ref, o_ref.dtype)


def _gemm_kernel_ktiled(act, alpha, out_scale, has_res, nk, *refs):
    if has_res:
        w_ref, p_ref, b_ref, r_ref, o_ref, acc_ref = refs
    else:
        w_ref, p_ref, b_ref, o_ref, acc_ref = refs
        r_ref = None
    k = pl.program_id(2)

    @pl.when(k == 0)
    def _init():
        acc_ref[...] = jnp.broadcast_to(b_ref[...], acc_ref.shape)

    acc_ref[...] += jnp.dot(w_ref[...], p_ref[...],
                            preferred_element_type=jnp.float32)

    @pl.when(k == nk - 1)
    def _finalize():
        o_ref[...] = _epilogue(acc_ref[...], act, alpha, out_scale, r_ref,
                               o_ref.dtype)


def fused_conv_gemm(wmat, bias, patches, act, alpha, out_scale, residual,
                    out_dtype):
    """out = act(W @ P + b) * out_scale (+ residual).
    M (flattened spatial) lane-dense, Cout on sublanes (padded to 16 for bf16)."""
    B, K, M = patches.shape
    Cout = wmat.shape[0]
    Cp = _round_up(Cout, 16)
    # Big lane tiles (pad M up to the tile) amortize per-step overhead and keep
    # output stores unmasked/lane-dense.
    tm = 512 if M > 512 else _round_up(M, 128)
    Mp = _round_up(M, tm)
    nm = Mp // tm
    if K <= SINGLE_K_MAX:
        tk, nk = _round_up(K, 16), 1
    else:
        tk = 512
        nk = (K + tk - 1) // tk
    Kp = nk * tk

    w_p = jnp.pad(wmat.astype(ACT_DTYPE), ((0, Cp - Cout), (0, Kp - K)))
    p_p = jnp.pad(patches.astype(ACT_DTYPE), ((0, 0), (0, Kp - K), (0, Mp - M)))
    b_p = jnp.pad(bias.astype(jnp.float32), (0, Cp - Cout)).reshape(Cp, 1)
    has_res = residual is not None
    if has_res:
        r_p = jnp.pad(residual, ((0, 0), (0, Cp - Cout), (0, Mp - M)))

    inputs = [w_p, p_p, b_p]
    if nk == 1:
        grid = (B, nm)
        in_specs = [
            pl.BlockSpec((Cp, tk), lambda b, m: (0, 0)),
            pl.BlockSpec((None, tk, tm), lambda b, m: (b, 0, m)),
            pl.BlockSpec((Cp, 1), lambda b, m: (0, 0)),
        ]
        res_spec = pl.BlockSpec((None, Cp, tm), lambda b, m: (b, 0, m))
        out_spec = pl.BlockSpec((None, Cp, tm), lambda b, m: (b, 0, m))
        kernel = functools.partial(_gemm_kernel_single, act, float(alpha),
                                   float(out_scale), has_res)
        scratch = []
        semantics = ("parallel", "parallel")
    else:
        grid = (B, nm, nk)
        in_specs = [
            pl.BlockSpec((Cp, tk), lambda b, m, k: (0, k)),
            pl.BlockSpec((None, tk, tm), lambda b, m, k: (b, k, m)),
            pl.BlockSpec((Cp, 1), lambda b, m, k: (0, 0)),
        ]
        res_spec = pl.BlockSpec((None, Cp, tm), lambda b, m, k: (b, 0, m))
        out_spec = pl.BlockSpec((None, Cp, tm), lambda b, m, k: (b, 0, m))
        kernel = functools.partial(_gemm_kernel_ktiled, act, float(alpha),
                                   float(out_scale), has_res, nk)
        scratch = [pltpu.VMEM((Cp, tm), jnp.float32)]
        semantics = ("parallel", "parallel", "arbitrary")
    if has_res:
        inputs.append(r_p)
        in_specs.append(res_spec)

    out_isz = np.dtype(out_dtype).itemsize
    res_isz = np.dtype(r_p.dtype).itemsize if has_res else 0
    tile_bytes = (2 * (Cp * tk * 2 + tk * tm * 2
                       + Cp * tm * out_isz + Cp * tm * res_isz)
                  + (Cp * tm * 4 if nk > 1 else 0))
    out = pl.pallas_call(
        kernel,
        out_shape=jax.ShapeDtypeStruct((B, Cp, Mp), out_dtype),
        grid=grid,
        in_specs=in_specs,
        out_specs=out_spec,
        scratch_shapes=scratch,
        compiler_params=pltpu.CompilerParams(
            dimension_semantics=semantics,
            vmem_limit_bytes=_vmem_limit(tile_bytes)),
    )(*inputs)
    return out[:, :Cout, :M]


# ----------------------------------------------------------------------------
# Conv2d / ConvTranspose2d wrappers (NCHW, no full-tensor transposes)
# ----------------------------------------------------------------------------
def conv2d(x, w, b, stride=1, padding=0, act=None, alpha=ALPHA_PRELU,
           residual=None, out_scale=1.0, out_dtype=ACT_DTYPE):
    """PyTorch Conv2d semantics.  x: (B,Cin,H,W); w: (Cout,Cin,kh,kw); b: (Cout,).
    padding: int or ((top,bottom),(left,right)).  residual: (B,Cout,Ho,Wo)."""
    B, Cin, H, W = x.shape
    Cout, _, kh, kw = w.shape
    pads = ((padding, padding), (padding, padding)) if isinstance(padding, int) \
        else padding
    (pt, pb), (plf, prt) = pads
    Ho = (H + pt + pb - kh) // stride + 1
    Wo = (W + plf + prt - kw) // stride + 1

    if stride == 1 and (kh > 1 or kw > 1):
        Ci = _round_up(Cin, 16)
        Cp = _round_up(Cout, 16)
        Wp = W + plf + prt
        Mout = _round_up((Ho - 1) * Wp + Wo, 128)
        Min = _round_up(Mout + (kh - 1) * Wp + kw - 1, 128)
        foot = 2 * (Ci * Min * 2 + 2 * Cp * Mout * 4) + kh * kw * Cp * Ci * 2
        if foot <= DIRECT_VMEM_BUDGET:
            return direct_conv(x, w, b, pads, act, alpha, out_scale, residual,
                               out_dtype)
        # TODO(synk): row-band halo tiling for large spatial extents; falls back
        # to HBM patch materialization below.

    if kh == 1 and kw == 1 and stride == 1 and pt == pb == plf == prt == 0:
        patches = x.reshape(B, Cin, H * W)          # 1x1 conv: pure reshape
    else:
        # TODO(synk): strided KK-convs could use a space-to-depth + direct path
        # instead of kh*kw HBM patch duplication.
        xp = jnp.pad(x, ((0, 0), (0, 0), (pt, pb), (plf, prt)))
        slabs = [xp[:, :, i:i + stride * (Ho - 1) + 1:stride,
                       j:j + stride * (Wo - 1) + 1:stride]
                 for i in range(kh) for j in range(kw)]
        # K order (ci, ki, kj) matches w.reshape(Cout, Cin*kh*kw).
        patches = jnp.stack(slabs, axis=2).reshape(B, Cin * kh * kw, Ho * Wo)

    wmat = w.reshape(Cout, Cin * kh * kw)
    res2 = None if residual is None else residual.reshape(B, Cout, Ho * Wo)
    out = fused_conv_gemm(wmat, b, patches, act, alpha, out_scale, res2,
                          out_dtype)
    return out.reshape(B, Cout, Ho, Wo)


def _phase_taps(k, s, p):
    info = []
    for r in range(s):
        rp = (r + p) % s
        n = (k - rp + s - 1) // s
        off = (r + p) // s
        info.append((rp, n, off))
    pad_left = max(n - 1 - off for (_, n, off) in info)
    extent = pad_left + max(off for (_, _, off) in info) + 1
    return info, pad_left, extent


def _phase_weights(w, s, p):
    """ConvTranspose2d weight (Cin,Cout,kh,kw) -> equivalent stride-1 conv weight
    (s*s*Cout, Cin, Ty, Tx); output channel order is (ry, rx, cout)."""
    Cin, Cout, kh, kw = w.shape
    ty_info, ply, Ty = _phase_taps(kh, s, p)
    tx_info, plx, Tx = _phase_taps(kw, s, p)
    wt = jnp.transpose(w, (1, 0, 2, 3))             # tiny weight tensor only
    wc = jnp.zeros((s * s * Cout, Cin, Ty, Tx), w.dtype)
    for ry in range(s):
        rpy, ny, offy = ty_info[ry]
        for rx in range(s):
            rpx, nx, offx = tx_info[rx]
            c0 = (ry * s + rx) * Cout
            for my in range(ny):
                for mx in range(nx):
                    wc = wc.at[c0:c0 + Cout, :,
                               ply + offy - my, plx + offx - mx].set(
                        wt[:, :, rpy + s * my, rpx + s * mx])
    return wc, (ply, Ty), (plx, Tx)


def conv_transpose2d(x, w, b, stride, padding, act=None, alpha=ALPHA_PRELU,
                     residual=None, out_scale=1.0, out_dtype=ACT_DTYPE):
    """PyTorch ConvTranspose2d via sub-pixel phase decomposition: one dense
    stride-1 conv (s*s*Cout channels) + a single depth-to-space reshape."""
    B, Cin, H, W = x.shape
    _, Cout, kh, kw = w.shape
    s, p = stride, padding
    Ho = (H - 1) * s - 2 * p + kh
    Wo = (W - 1) * s - 2 * p + kw
    assert Ho % s == 0 and Wo % s == 0   # TODO(synk): no output_padding support
    Hq, Wq = Ho // s, Wo // s
    wc, (ply, Ty), (plx, Tx) = _phase_weights(w, s, p)
    pry = Hq + Ty - 1 - ply - H
    prx = Wq + Tx - 1 - plx - W
    assert pry >= 0 and prx >= 0
    bc = jnp.tile(b, s * s)
    resc = None
    if residual is not None:     # space-to-depth: one pass, no strided scatters
        resc = residual.reshape(B, Cout, Hq, s, Wq, s).transpose(
            0, 3, 5, 1, 2, 4).reshape(B, s * s * Cout, Hq, Wq)
    oc = conv2d(x, wc, bc, stride=1, padding=((ply, pry), (plx, prx)),
                act=act, alpha=alpha, residual=resc, out_scale=out_scale,
                out_dtype=out_dtype)
    # depth-to-space: (B, s*s*Cout, Hq, Wq) -> (B, Cout, Ho, Wo), single pass
    return oc.reshape(B, s, s, Cout, Hq, Wq).transpose(
        0, 3, 4, 1, 5, 2).reshape(B, Cout, Ho, Wo)


# ----------------------------------------------------------------------------
# Parameter initialization (deterministic kaiming-normal, zero biases)
# ----------------------------------------------------------------------------
class _Keys:
    def __init__(self, key):
        self._key = key

    def __call__(self):
        self._key, sub = jax.random.split(self._key)
        return sub


def _kaiming(key, shape, fan_in):
    return jax.random.normal(key, shape, jnp.float32) * math.sqrt(2.0 / fan_in)


def init_conv(nk, cin, cout, k):
    return {"w": _kaiming(nk(), (cout, cin, k, k), cin * k * k),
            "b": jnp.zeros((cout,), jnp.float32)}


def init_deconv(nk, cin, cout, k):
    # PyTorch ConvTranspose2d weight shape: (cin, cout, k, k)
    return {"w": _kaiming(nk(), (cin, cout, k, k), cout * k * k),
            "b": jnp.zeros((cout,), jnp.float32)}


def init_params(key, cfg):
    nk = _Keys(key)
    C, bf, ft = cfg["num_channels"], cfg["base_filter"], cfg["feat"]
    KK = {2: 6, 4: 8, 8: 12}[cfg["scale_factor"]]

    def resblock(ch):
        return {"c1": init_conv(nk, ch, ch, 3), "c2": init_conv(nk, ch, ch, 3)}

    # FNet  (TODO(synk): exact FNet architecture not provided; FRVSR-style stack)
    layers, cin = [], 2 * C
    for _ in range(cfg["flow_layer_num"]):
        layers.append(init_conv(nk, cin, cfg["f"], 3))
        cin = cfg["f"]
    fnet = {"layers": layers, "out": init_conv(nk, cin, 2, 3)}

    # RBPN
    r = {"feat0": init_conv(nk, C, bf, 3),
         "feat1": init_conv(nk, 2 * C + 2, bf, 3)}

    def up():
        return {"c1": init_deconv(nk, ft, ft, KK),
                "c2": init_conv(nk, ft, ft, KK),
                "c3": init_deconv(nk, ft, ft, KK)}

    def down():
        return {"c1": init_conv(nk, ft, ft, KK),
                "c2": init_deconv(nk, ft, ft, KK),
                "c3": init_conv(nk, ft, ft, KK)}

    d = {"feat1": init_conv(nk, bf, ft, 1)}
    d["up1"], d["down1"] = up(), down()
    d["up2"], d["down2"] = up(), down()
    d["up3"] = up()
    d["output"] = init_conv(nk, cfg["num_stages"] * ft, ft, 1)
    r["dbpn"] = d

    r["res_feat1"] = {"blocks": [resblock(bf) for _ in range(cfg["n_resblock"])],
                      "tail": init_deconv(nk, bf, ft, KK)}
    r["res_feat2"] = {"blocks": [resblock(ft) for _ in range(cfg["n_resblock"])],
                      "tail": init_conv(nk, ft, ft, 3)}
    r["res_feat3"] = {"blocks": [resblock(ft) for _ in range(cfg["n_resblock"])],
                      "tail": init_conv(nk, ft, bf, KK)}
    r["output"] = init_conv(nk, (cfg["window"] - 1) * ft, C, 3)
    return {"fnet": fnet, "rbpn": r}


# ----------------------------------------------------------------------------
# Module forward passes (mirror the PyTorch graph; residual adds fused)
# ----------------------------------------------------------------------------
def resnet_block(p, x, res_scale):
    # TODO(synk): fuse both 3x3 convs into one pallas_call (intermediate in VMEM).
    out = conv2d(x, p["c1"]["w"], p["c1"]["b"], 1, 1, "prelu")
    return conv2d(out, p["c2"]["w"], p["c2"]["b"], 1, 1, None,
                  residual=x, out_scale=res_scale)


def up_block(p, x, st, pd):
    h0 = conv_transpose2d(x, p["c1"]["w"], p["c1"]["b"], st, pd, "prelu")
    l0 = conv2d(h0, p["c2"]["w"], p["c2"]["b"], st, pd, "prelu")
    return conv_transpose2d(l0 - x, p["c3"]["w"], p["c3"]["b"], st, pd, "prelu",
                            residual=h0)


def down_block(p, x, st, pd):
    l0 = conv2d(x, p["c1"]["w"], p["c1"]["b"], st, pd, "prelu")
    h0 = conv_transpose2d(l0, p["c2"]["w"], p["c2"]["b"], st, pd, "prelu")
    return conv2d(h0 - x, p["c3"]["w"], p["c3"]["b"], st, pd, "prelu",
                  residual=l0)


def dbpn_forward(p, x, st, pd):
    x = conv2d(x, p["feat1"]["w"], p["feat1"]["b"], 1, 0, "prelu")
    h1 = up_block(p["up1"], x, st, pd)
    h2 = up_block(p["up2"], down_block(p["down1"], h1, st, pd), st, pd)
    h3 = up_block(p["up3"], down_block(p["down2"], h2, st, pd), st, pd)
    cat = jnp.concatenate([h3, h2, h1], axis=1)
    return conv2d(cat, p["output"]["w"], p["output"]["b"], 1, 0, None)


def res_feat1_forward(p, x, res_scale, st, pd):
    for blk in p["blocks"]:
        x = resnet_block(blk, x, res_scale)
    return conv_transpose2d(x, p["tail"]["w"], p["tail"]["b"], st, pd, "prelu")


def res_feat2_forward(p, x, res_scale, residual=None):
    for blk in p["blocks"]:
        x = resnet_block(blk, x, res_scale)
    return conv2d(x, p["tail"]["w"], p["tail"]["b"], 1, 1, "prelu",
                  residual=residual)


def res_feat3_forward(p, x, res_scale, st, pd):
    for blk in p["blocks"]:
        x = resnet_block(blk, x, res_scale)
    return conv2d(x, p["tail"]["w"], p["tail"]["b"], st, pd, "prelu")


def rbpn_forward(p, x, neighbors, flows, bicubic, cfg):
    st, pd = cfg["scale_factor"], 2
    B = x.shape[0]
    n = len(neighbors)
    x = x.astype(ACT_DTYPE)
    neighbors = [nb.astype(ACT_DTYPE) for nb in neighbors]
    flows = [fl.astype(ACT_DTYPE) for fl in flows]
    feat_input = conv2d(x, p["feat0"]["w"], p["feat0"]["b"], 1, 1, "prelu")
    # Batch all per-neighbor feat1 convs along the batch axis (one launch).
    cat = jnp.concatenate(
        [jnp.concatenate([x, neighbors[j], flows[j]], axis=1) for j in range(n)],
        axis=0)
    ff = conv2d(cat, p["feat1"]["w"], p["feat1"]["b"], 1, 1, "prelu")
    feat_frame = [ff[j * B:(j + 1) * B] for j in range(n)]
    Ht = []
    for j in range(n):
        h0 = dbpn_forward(p["dbpn"], feat_input, st, pd)
        # (torch.max(h0, dim=1) in the reference is computed but unused)
        h1 = res_feat1_forward(p["res_feat1"], feat_frame[j], cfg["res_scale"],
                               st, pd)
        h = res_feat2_forward(p["res_feat2"], h0 - h1, cfg["res_scale"],
                              residual=h0)
        Ht.append(h)
        feat_input = res_feat3_forward(p["res_feat3"], h, cfg["res_scale"],
                                       st, pd)
    out = jnp.concatenate(Ht, axis=1)
    return conv2d(out, p["output"]["w"], p["output"]["b"], 1, 1, None,
                  residual=bicubic if cfg["residual"] else None,
                  out_dtype=jnp.float32)


def fnet_forward(p, x, neighbor, gain):
    # TODO(synk): FNet class body was not given; standard conv+LeakyReLU flow net.
    h = jnp.concatenate([x, neighbor], axis=1).astype(ACT_DTYPE)
    for layer in p["layers"]:
        h = conv2d(h, layer["w"], layer["b"], 1, 1, "lrelu", ALPHA_LRELU)
    return conv2d(h, p["out"]["w"], p["out"]["b"], 1, 1, "tanh",
                  out_scale=gain, out_dtype=jnp.float32)   # gain folded in epilogue


def stn_warp(img, fx, fy):
    # TODO(synk): STN class body not given; bilinear warp with border padding.
    # TODO(synk): replace the 4 take_along_axis gathers with a Pallas kernel that
    # DMAs a bounded source row band per output row tile (|flow| <= gain).
    B, C, H, W = img.shape
    gx = jnp.clip(jnp.arange(W, dtype=jnp.float32)[None, None, :] + fx, 0.0, W - 1.0)
    gy = jnp.clip(jnp.arange(H, dtype=jnp.float32)[None, :, None] + fy, 0.0, H - 1.0)
    x0 = jnp.floor(gx); y0 = jnp.floor(gy)
    x1 = jnp.clip(x0 + 1, 0, W - 1); y1 = jnp.clip(y0 + 1, 0, H - 1)
    wx = (gx - x0)[:, None]; wy = (gy - y0)[:, None]
    flat = img.reshape(B, C, H * W)

    def gather(yi, xi):
        idx = (yi * W + xi).astype(jnp.int32).reshape(B, 1, H * W)
        idx = jnp.broadcast_to(idx, (B, C, H * W))
        return jnp.take_along_axis(flat, idx, axis=2).reshape(B, C, H, W)

    v00, v01 = gather(y0, x0), gather(y0, x1)
    v10, v11 = gather(y1, x0), gather(y1, x1)
    return ((1 - wx) * (1 - wy) * v00 + wx * (1 - wy) * v01 +
            (1 - wx) * wy * v10 + wx * wy * v11)


def composer_forward(params, inputs, neighbors, bicubics, cfg):
    B = inputs.shape[0]
    n = len(neighbors)
    # Batch the per-neighbor FNet + warp across neighbors along the batch axis.
    x_rep = jnp.concatenate([inputs] * n, axis=0)
    nb_cat = jnp.concatenate(neighbors, axis=0)
    flow_cat = fnet_forward(params["fnet"], x_rep, nb_cat, cfg["gain"])
    warp_cat = stn_warp(nb_cat, flow_cat[:, 0], flow_cat[:, 1])
    flows = [flow_cat[j * B:(j + 1) * B] for j in range(n)]
    warps = [warp_cat[j * B:(j + 1) * B] for j in range(n)]
    sr = rbpn_forward(params["rbpn"], inputs, neighbors, flows, bicubics, cfg)
    return sr, flows, warps


# ----------------------------------------------------------------------------
# Reference convs (for in-script validation of the Pallas paths)
# ----------------------------------------------------------------------------
def _ref_conv2d(x, w, b, stride, padding):
    pads = ((padding, padding), (padding, padding))
    y = jax.lax.conv_general_dilated(
        x, w, (stride, stride), pads, dimension_numbers=("NCHW", "OIHW", "NCHW"))
    return y + b[None, :, None, None]


def _ref_conv_transpose2d(x, w, b, s, p):
    _, _, kh, kw = w.shape
    wf = jnp.flip(w, (2, 3)).transpose(1, 0, 2, 3)
    y = jax.lax.conv_general_dilated(
        x, wf, (1, 1), ((kh - 1 - p, kh - 1 - p), (kw - 1 - p, kw - 1 - p)),
        lhs_dilation=(s, s), dimension_numbers=("NCHW", "OIHW", "NCHW"))
    return y + b[None, :, None, None]


# ----------------------------------------------------------------------------
# Main
# ----------------------------------------------------------------------------
if __name__ == "__main__":
    cfg = dict(window=3, scale_factor=2, num_channels=3, base_filter=8, feat=8,
               num_stages=3, n_resblock=1, residual=True, res_scale=1.0,
               gain=8.0, f=8, flow_layer_num=2)

    key = jax.random.PRNGKey(0)
    kparam, kx, kn0, kn1, kb, kt = jax.random.split(key, 6)
    params = init_params(kparam, cfg)

    # --- validate the Pallas conv paths against lax references (bf16 tolerance) ---
    kt1, kt2, kt3, kt4, kt5 = jax.random.split(kt, 5)
    xt = jax.random.normal(kt1, (2, 5, 9, 9), jnp.float32)
    wt = jax.random.normal(kt2, (7, 5, 3, 3), jnp.float32) * 0.2
    bt = jax.random.normal(kt3, (7,), jnp.float32) * 0.1
    got = conv2d(xt, wt, bt, 1, 1, None, out_dtype=jnp.float32)       # direct path
    assert bool(jnp.allclose(got, _ref_conv2d(xt, wt, bt, 1, 1),
                             atol=0.1, rtol=0.1)), "conv2d (direct) mismatch"
    ws = jax.random.normal(kt4, (7, 5, 6, 6), jnp.float32) * 0.1
    got = conv2d(xt, ws, bt, 2, 2, None, out_dtype=jnp.float32)       # strided GEMM
    assert bool(jnp.allclose(got, _ref_conv2d(xt, ws, bt, 2, 2),
                             atol=0.1, rtol=0.1)), "conv2d (strided) mismatch"
    wd = jax.random.normal(kt5, (5, 6, 6, 6), jnp.float32) * 0.1
    bd = jnp.zeros((6,), jnp.float32)
    got = conv_transpose2d(xt, wd, bd, 2, 2, act=None, out_dtype=jnp.float32)
    assert bool(jnp.allclose(got, _ref_conv_transpose2d(xt, wd, bd, 2, 2),
                             atol=0.1, rtol=0.1)), "conv_transpose2d mismatch"

    # --- full composer forward ---
    B, C, H, W = 2, cfg["num_channels"], 8, 8
    s = cfg["scale_factor"]
    x = jax.random.normal(kx, (B, C, H, W), jnp.float32)
    n0 = jax.random.normal(kn0, (B, C, H, W), jnp.float32)
    n1 = jax.random.normal(kn1, (B, C, H, W), jnp.float32)
    bicubic = jax.random.normal(kb, (B, C, H * s, W * s), jnp.float32)

    fwd = jax.jit(lambda xx, a, b2, bic:
                  composer_forward(params, xx, [a, b2], bic, cfg))
    sr, flows, warps = fwd(x, n0, n1, bicubic)
    jax.block_until_ready(sr)

    assert sr.shape == (B, C, H * s, W * s)
    assert flows[0].shape == (B, 2, H, W) and warps[0].shape == (B, C, H, W)
    assert bool(jnp.all(jnp.isfinite(sr)))
    print("KERNEL_OK")
</pallas_src>

<mosaic_0001>
module attributes {stable_mosaic.version = 11 : i64} {
  func.func @_direct_conv_kernel(%arg0: i32, %arg1: memref<9x16x16xbf16, #tpu.memory_space<vmem>>, %arg2: memref<1x16x256xbf16, #tpu.memory_space<vmem>>, %arg3: memref<16x1xf32, #tpu.memory_space<vmem>>, %arg4: memref<1x16x128xf32, #tpu.memory_space<vmem>>) attributes {dimension_semantics = [#tpu.dimension_semantics<parallel>], iteration_bounds = array<i64: 2>, scalar_prefetch = 0 : i64, scratch_operands = 0 : i64, tpu.core_type = #tpu.core_type<tc>, window_params = [{pipeline_mode = #tpu.pipeline_mode<synchronous>, transform_indices = @transform_0, window_bounds = array<i64: 9, 16, 16>}, {transform_indices = @transform_1, window_bounds = array<i64: 1, 16, 256>}, {pipeline_mode = #tpu.pipeline_mode<synchronous>, transform_indices = @transform_2, window_bounds = array<i64: 16, 1>}, {transform_indices = @transform_3, window_bounds = array<i64: 1, 16, 128>}]} {
    %c0 = arith.constant 0 : index
    %c0_0 = arith.constant 0 : index
    %c0_1 = arith.constant 0 : index
    %0 = vector.load %arg2[%c0, %c0_0, %c0_1] : memref<1x16x256xbf16, #tpu.memory_space<vmem>>, vector<1x16x128xbf16>
    %1 = vector.shape_cast %0 : vector<1x16x128xbf16> to vector<16x128xbf16>
    %c0_2 = arith.constant 0 : index
    %c0_3 = arith.constant 0 : index
    %c0_4 = arith.constant 0 : index
    %2 = vector.load %arg1[%c0_2, %c0_3, %c0_4] : memref<9x16x16xbf16, #tpu.memory_space<vmem>>, vector<1x16x16xbf16>
    %3 = vector.shape_cast %2 : vector<1x16x16xbf16> to vector<16x16xbf16>
    %cst = arith.constant dense<0.000000e+00> : vector<16x128xf32>
    %4 = tpu.matmul %3, %1, %cst {dimension_numbers = #tpu.dot_dimension_numbers<[1], [0], [0], [1], [0, 0, 1, 1], [], []>} : vector<16x16xbf16>, vector<16x128xbf16>, vector<16x128xf32> -> vector<16x128xf32>
    %c0_5 = arith.constant 0 : index
    %c0_6 = arith.constant 0 : index
    %c1 = arith.constant 1 : index
    %5 = vector.load %arg2[%c0_5, %c0_6, %c1] : memref<1x16x256xbf16, #tpu.memory_space<vmem>>, vector<1x16x128xbf16>
    %6 = vector.shape_cast %5 : vector<1x16x128xbf16> to vector<16x128xbf16>
    %c1_7 = arith.constant 1 : index
    %c0_8 = arith.constant 0 : index
    %c0_9 = arith.constant 0 : index
    %7 = vector.load %arg1[%c1_7, %c0_8, %c0_9] : memref<9x16x16xbf16, #tpu.memory_space<vmem>>, vector<1x16x16xbf16>
    %8 = vector.shape_cast %7 : vector<1x16x16xbf16> to vector<16x16xbf16>
    %cst_10 = arith.constant dense<0.000000e+00> : vector<16x128xf32>
    %9 = tpu.matmul %8, %6, %cst_10 {dimension_numbers = #tpu.dot_dimension_numbers<[1], [0], [0], [1], [0, 0, 1, 1], [], []>} : vector<16x16xbf16>, vector<16x128xbf16>, vector<16x128xf32> -> vector<16x128xf32>
    %10 = arith.addf %4, %9 : vector<16x128xf32>
    %c0_11 = arith.constant 0 : index
    %c0_12 = arith.constant 0 : index
    %c2 = arith.constant 2 : index
    %11 = vector.load %arg2[%c0_11, %c0_12, %c2] : memref<1x16x256xbf16, #tpu.memory_space<vmem>>, vector<1x16x128xbf16>
    %12 = vector.shape_cast %11 : vector<1x16x128xbf16> to vector<16x128xbf16>
    %c2_13 = arith.constant 2 : index
    %c0_14 = arith.constant 0 : index
    %c0_15 = arith.constant 0 : index
    %13 = vector.load %arg1[%c2_13, %c0_14, %c0_15] : memref<9x16x16xbf16, #tpu.memory_space<vmem>>, vector<1x16x16xbf16>
    %14 = vector.shape_cast %13 : vector<1x16x16xbf16> to vector<16x16xbf16>
    %cst_16 = arith.constant dense<0.000000e+00> : vector<16x128xf32>
    %15 = tpu.matmul %14, %12, %cst_16 {dimension_numbers = #tpu.dot_dimension_numbers<[1], [0], [0], [1], [0, 0, 1, 1], [], []>} : vector<16x16xbf16>, vector<16x128xbf16>, vector<16x128xf32> -> vector<16x128xf32>
    %16 = arith.addf %10, %15 : vector<16x128xf32>
    %c0_17 = arith.constant 0 : index
    %c0_18 = arith.constant 0 : index
    %c11 = arith.constant 11 : index
    %17 = vector.load %arg2[%c0_17, %c0_18, %c11] : memref<1x16x256xbf16, #tpu.memory_space<vmem>>, vector<1x16x128xbf16>
    %18 = vector.shape_cast %17 : vector<1x16x128xbf16> to vector<16x128xbf16>
    %c3 = arith.constant 3 : index
    %c0_19 = arith.constant 0 : index
    %c0_20 = arith.constant 0 : index
    %19 = vector.load %arg1[%c3, %c0_19, %c0_20] : memref<9x16x16xbf16, #tpu.memory_space<vmem>>, vector<1x16x16xbf16>
    %20 = vector.shape_cast %19 : vector<1x16x16xbf16> to vector<16x16xbf16>
    %cst_21 = arith.constant dense<0.000000e+00> : vector<16x128xf32>
    %21 = tpu.matmul %20, %18, %cst_21 {dimension_numbers = #tpu.dot_dimension_numbers<[1], [0], [0], [1], [0, 0, 1, 1], [], []>} : vector<16x16xbf16>, vector<16x128xbf16>, vector<16x128xf32> -> vector<16x128xf32>
    %22 = arith.addf %16, %21 : vector<16x128xf32>
    %c0_22 = arith.constant 0 : index
    %c0_23 = arith.constant 0 : index
    %c12 = arith.constant 12 : index
    %23 = vector.load %arg2[%c0_22, %c0_23, %c12] : memref<1x16x256xbf16, #tpu.memory_space<vmem>>, vector<1x16x128xbf16>
    %24 = vector.shape_cast %23 : vector<1x16x128xbf16> to vector<16x128xbf16>
    %c4 = arith.constant 4 : index
    %c0_24 = arith.constant 0 : index
    %c0_25 = arith.constant 0 : index
    %25 = vector.load %arg1[%c4, %c0_24, %c0_25] : memref<9x16x16xbf16, #tpu.memory_space<vmem>>, vector<1x16x16xbf16>
    %26 = vector.shape_cast %25 : vector<1x16x16xbf16> to vector<16x16xbf16>
    %cst_26 = arith.constant dense<0.000000e+00> : vector<16x128xf32>
    %27 = tpu.matmul %26, %24, %cst_26 {dimension_numbers = #tpu.dot_dimension_numbers<[1], [0], [0], [1], [0, 0, 1, 1], [], []>} : vector<16x16xbf16>, vector<16x128xbf16>, vector<16x128xf32> -> vector<16x128xf32>
    %28 = arith.addf %22, %27 : vector<16x128xf32>
    %c0_27 = arith.constant 0 : index
    %c0_28 = arith.constant 0 : index
    %c13 = arith.constant 13 : index
    %29 = vector.load %arg2[%c0_27, %c0_28, %c13] : memref<1x16x256xbf16, #tpu.memory_space<vmem>>, vector<1x16x128xbf16>
    %30 = vector.shape_cast %29 : vector<1x16x128xbf16> to vector<16x128xbf16>
    %c5 = arith.constant 5 : index
    %c0_29 = arith.constant 0 : index
    %c0_30 = arith.constant 0 : index
    %31 = vector.load %arg1[%c5, %c0_29, %c0_30] : memref<9x16x16xbf16, #tpu.memory_space<vmem>>, vector<1x16x16xbf16>
    %32 = vector.shape_cast %31 : vector<1x16x16xbf16> to vector<16x16xbf16>
    %cst_31 = arith.constant dense<0.000000e+00> : vector<16x128xf32>
    %33 = tpu.matmul %32, %30, %cst_31 {dimension_numbers = #tpu.dot_dimension_numbers<[1], [0], [0], [1], [0, 0, 1, 1], [], []>} : vector<16x16xbf16>, vector<16x128xbf16>, vector<16x128xf32> -> vector<16x128xf32>
    %34 = arith.addf %28, %33 : vector<16x128xf32>
    %c0_32 = arith.constant 0 : index
    %c0_33 = arith.constant 0 : index
    %c22 = arith.constant 22 : index
    %35 = vector.load %arg2[%c0_32, %c0_33, %c22] : memref<1x16x256xbf16, #tpu.memory_space<vmem>>, vector<1x16x128xbf16>
    %36 = vector.shape_cast %35 : vector<1x16x128xbf16> to vector<16x128xbf16>
    %c6 = arith.constant 6 : index
    %c0_34 = arith.constant 0 : index
    %c0_35 = arith.constant 0 : index
    %37 = vector.load %arg1[%c6, %c0_34, %c0_35] : memref<9x16x16xbf16, #tpu.memory_space<vmem>>, vector<1x16x16xbf16>
    %38 = vector.shape_cast %37 : vector<1x16x16xbf16> to vector<16x16xbf16>
    %cst_36 = arith.constant dense<0.000000e+00> : vector<16x128xf32>
    %39 = tpu.matmul %38, %36, %cst_36 {dimension_numbers = #tpu.dot_dimension_numbers<[1], [0], [0], [1], [0, 0, 1, 1], [], []>} : vector<16x16xbf16>, vector<16x128xbf16>, vector<16x128xf32> -> vector<16x128xf32>
    %40 = arith.addf %34, %39 : vector<16x128xf32>
    %c0_37 = arith.constant 0 : index
    %c0_38 = arith.constant 0 : index
    %c23 = arith.constant 23 : index
    %41 = vector.load %arg2[%c0_37, %c0_38, %c23] : memref<1x16x256xbf16, #tpu.memory_space<vmem>>, vector<1x16x128xbf16>
    %42 = vector.shape_cast %41 : vector<1x16x128xbf16> to vector<16x128xbf16>
    %c7 = arith.constant 7 : index
    %c0_39 = arith.constant 0 : index
    %c0_40 = arith.constant 0 : index
    %43 = vector.load %arg1[%c7, %c0_39, %c0_40] : memref<9x16x16xbf16, #tpu.memory_space<vmem>>, vector<1x16x16xbf16>
    %44 = vector.shape_cast %43 : vector<1x16x16xbf16> to vector<16x16xbf16>
    %cst_41 = arith.constant dense<0.000000e+00> : vector<16x128xf32>
    %45 = tpu.matmul %44, %42, %cst_41 {dimension_numbers = #tpu.dot_dimension_numbers<[1], [0], [0], [1], [0, 0, 1, 1], [], []>} : vector<16x16xbf16>, vector<16x128xbf16>, vector<16x128xf32> -> vector<16x128xf32>
    %46 = arith.addf %40, %45 : vector<16x128xf32>
    %c0_42 = arith.constant 0 : index
    %c0_43 = arith.constant 0 : index
    %c24 = arith.constant 24 : index
    %47 = vector.load %arg2[%c0_42, %c0_43, %c24] : memref<1x16x256xbf16, #tpu.memory_space<vmem>>, vector<1x16x128xbf16>
    %48 = vector.shape_cast %47 : vector<1x16x128xbf16> to vector<16x128xbf16>
    %c8 = arith.constant 8 : index
    %c0_44 = arith.constant 0 : index
    %c0_45 = arith.constant 0 : index
    %49 = vector.load %arg1[%c8, %c0_44, %c0_45] : memref<9x16x16xbf16, #tpu.memory_space<vmem>>, vector<1x16x16xbf16>
    %50 = vector.shape_cast %49 : vector<1x16x16xbf16> to vector<16x16xbf16>
    %cst_46 = arith.constant dense<0.000000e+00> : vector<16x128xf32>
    %51 = tpu.matmul %50, %48, %cst_46 {dimension_numbers = #tpu.dot_dimension_numbers<[1], [0], [0], [1], [0, 0, 1, 1], [], []>} : vector<16x16xbf16>, vector<16x128xbf16>, vector<16x128xf32> -> vector<16x128xf32>
    %52 = arith.addf %46, %51 : vector<16x128xf32>
    %c0_47 = arith.constant 0 : index
    %c0_48 = arith.constant 0 : index
    %53 = vector.load %arg3[%c0_47, %c0_48] : memref<16x1xf32, #tpu.memory_space<vmem>>, vector<16x1xf32>
    %54 = vector.broadcast %53 : vector<16x1xf32> to vector<16x128xf32>
    %55 = arith.addf %52, %54 : vector<16x128xf32>
    %c0_49 = arith.constant 0 : index
    %c0_50 = arith.constant 0 : index
    %c0_51 = arith.constant 0 : index
    %56 = vector.load %arg4[%c0_49, %c0_50, %c0_51] : memref<1x16x128xf32, #tpu.memory_space<vmem>>, vector<1x16x128xf32>
    %57 = vector.shape_cast %56 : vector<1x16x128xf32> to vector<16x128xf32>
    %58 = vector.shape_cast %55 : vector<16x128xf32> to vector<1x16x128xf32>
    tpu.vector_store %arg4[%c0_49, %c0_50, %c0_51], %58 {strides = array<i32>} : memref<1x16x128xf32, #tpu.memory_space<vmem>>, vector<1x16x128xf32>,
    return
  }
  func.func @transform_0(%arg0: i32) -> (i32, i32, i32) {
    %c0_i32 = arith.constant 0 : i32
    %c0_i32_0 = arith.constant 0 : i32
    %c0_i32_1 = arith.constant 0 : i32
    %c0_i32_2 = arith.constant 0 : i32
    return %c0_i32, %c0_i32_0, %c0_i32_1 : i32, i32, i32
  }
  func.func @transform_1(%arg0: i32) -> (i32, i32, i32) {
    %c0_i32 = arith.constant 0 : i32
    %c0_i32_0 = arith.constant 0 : i32
    %c0_i32_1 = arith.constant 0 : i32
    return %arg0, %c0_i32, %c0_i32_0 : i32, i32, i32
  }
  func.func @transform_2(%arg0: i32) -> (i32, i32) {
    %c0_i32 = arith.constant 0 : i32
    %c0_i32_0 = arith.constant 0 : i32
    %c0_i32_1 = arith.constant 0 : i32
    return %c0_i32, %c0_i32_0 : i32, i32
  }
  func.func @transform_3(%arg0: i32) -> (i32, i32, i32) {
    %c0_i32 = arith.constant 0 : i32
    %c0_i32_0 = arith.constant 0 : i32
    %c0_i32_1 = arith.constant 0 : i32
    return %arg0, %c0_i32, %c0_i32_0 : i32, i32, i32
  }
}

</mosaic_0001>

<llo_original>
// kernel: tpu_custom_call.1
$region0: #{tpu_custom_call.1}
  #allocation0 [shape = 'u32[]', space=smem, size = 0x4, offset = 0x4, fixed_abs, tag = 'smem constant byte address 0x4 - core index']
  #allocation1 [shape = 'u32[144,128]{1,0:T(1,128)}', space=vmem, size = 0x12000, scoped, tag = 'internal scratch']
  %s0 = inlined_call_operand.hbm [shape: bf16[9,16,16], index: 0, kind: input, shape index: {}]
  %s1 = inlined_call_operand.hbm [shape: bf16[2,16,256], index: 1, kind: input, shape index: {}]
  %s2 = inlined_call_operand.vmem [shape: f32[16,1], index: 2, kind: input, shape index: {}]
  %s3 = inlined_call_operand.hbm [shape: f32[2,16,128], index: 3, kind: output, shape index: {}]
  %s4 = sld [smem:[#allocation0]]
  $region53: #{tpu_custom_call.1} parent=0
    _
  %s6 = ssub.s32 1, %s4
  %s7 = scalar_select 0, %s6, %s4
  $region1: #{tpu_custom_call.1} parent=0
    #allocation2 [shape = 'u8[36864]{0}', space=vmem, size = 0x9000, scoped, tag = 'input window, operand 0, single buffered']
    #allocation3 [shape = 's32[2]{0}', space=sflag, size = 0x8, scoped, tag = 'scoped memory for tpu_custom_call.1']
    #allocation4 [shape = 's32[2]{0}', space=sflag, size = 0x8, scoped, tag = 'scoped memory for tpu_custom_call.1']
    #allocation5 [shape = 'u8[16384]{0}', space=vmem, size = 0x4000, scoped, tag = 'input window, operand 1']
    #allocation6 [shape = 's32[2]{0}', space=sflag, size = 0x8, scoped, tag = 'scoped memory for tpu_custom_call.1']
    #allocation7 [shape = 'u8[16384]{0}', space=vmem, size = 0x4000, scoped, tag = 'output window, operand 0']
    %8 = vsyncpa [#allocation3], 0
    %9 = vsyncpa [#allocation6], 0
    %s10 = scalar_lea.sflag [#allocation6], 1
    %11 = vsyncpa %s10, 0
    %12 = vsyncpa [#allocation4], 0
    %s13 = scalar_lea.sflag [#allocation4], 1
    %14 = vsyncpa %s13, 0
    loop: start=0, step=1, limit=4
    $region2: #{tpu_custom_call.1} parent=1 // loop_pre_header
      _
    $region3: #{tpu_custom_call.1} parent=1 // loop_header
      %s16 = sphi 0, %s20
      %p17 = scmp.ge.s32.totalorder %s16, 4
      %s24 = sphi 0, %s24
      %s26 = sphi 0, %s24
      %s27 = sphi 0, %s26
      %s41 = sphi 0, %s27
      %s47 = sphi 0, %s49
      %s50 = sphi 0, %s47
      %s51 = sphi 0, %s50
      %s67 = sphi 0, %s51
      %s71 = sphi 0, %s71
      %s73 = sphi 0, %s71
      %s74 = sphi 0, %s73
      %s88 = sphi 0, %s74
      %s94 = sphi 0, %s96
      %s97 = sphi 0, %s94
      %s98 = sphi 0, %s97
      %s114 = sphi 0, %s98
    $region4: #{tpu_custom_call.1} parent=1 // loop_header_branch
      %19 = sbr.rel (%p17) target = $region8
    $region5: #{tpu_custom_call.1} parent=1 // loop_body
      %s21 = ssub.s32 %s16, 1
      %s22 = ssub.s32 %s16, 2
      %s23 = sadd.s32 %s16, 1
      %s25 = sadd.s32 %s24, 1
      %p28 = scmp.eq.s32.totalorder %s16, 1
      %p29 = scmp.ne.s32.totalorder %s24, %s26
      %p30 = scmp.eq.s32.totalorder %s16, 0
      %p31 = por %p29, %p30
      %p32 = scmp.ne.s32.totalorder %s24, %s26
      %p33 = scmp.eq.s32.totalorder %s21, 1
      %p34 = por %p32, %p33
      %p35 = scmp.ne.s32.totalorder %s26, %s27
      %p36 = scmp.eq.s32.totalorder %s21, 0
      %p37 = por %p35, %p36
      %p38 = scmp.ne.s32.totalorder %s26, %s27
      %p39 = scmp.eq.s32.totalorder %s22, 1
      %p40 = por %p38, %p39
      %p42 = scmp.ne.s32.totalorder %s27, %s41
      %p43 = scmp.eq.s32.totalorder %s22, 0
      %p44 = por %p42, %p43
      %s45 = ssub.s32 %s16, %s23
      %p46 = scmp.eq.s32.totalorder %s45, 0
      %s48 = sadd.s32 %s47, 1
      %s49 = scalar_select %p46, %s47, %s48
      %p52 = pneg %p46
      %p53 = scmp.eq.s32.totalorder %s16, 1
      %p54 = por %p52, %p53
      %p55 = scmp.ne.s32.totalorder %s47, %s50
      %p56 = scmp.eq.s32.totalorder %s16, 0
      %p57 = por %p55, %p56
      %p58 = scmp.ne.s32.totalorder %s47, %s50
      %p59 = scmp.eq.s32.totalorder %s21, 1
      %p60 = por %p58, %p59
      %p61 = scmp.ne.s32.totalorder %s50, %s51
      %p62 = scmp.eq.s32.totalorder %s21, 0
      %p63 = por %p61, %p62
      %p64 = scmp.ne.s32.totalorder %s50, %s51
      %p65 = scmp.eq.s32.totalorder %s22, 1
      %p66 = por %p64, %p65
      %p68 = scmp.ne.s32.totalorder %s51, %s67
      %p69 = scmp.eq.s32.totalorder %s22, 0
      %p70 = por %p68, %p69
      %s72 = sadd.s32 %s71, 1
      %p75 = scmp.eq.s32.totalorder %s16, 1
      %p76 = scmp.ne.s32.totalorder %s71, %s73
      %p77 = scmp.eq.s32.totalorder %s16, 0
      %p78 = por %p76, %p77
      %p79 = scmp.ne.s32.totalorder %s71, %s73
      %p80 = scmp.eq.s32.totalorder %s21, 1
      %p81 = por %p79, %p80
      %p82 = scmp.ne.s32.totalorder %s73, %s74
      %p83 = scmp.eq.s32.totalorder %s21, 0
      %p84 = por %p82, %p83
      %p85 = scmp.ne.s32.totalorder %s73, %s74
      %p86 = scmp.eq.s32.totalorder %s22, 1
      %p87 = por %p85, %p86
      %p89 = scmp.ne.s32.totalorder %s74, %s88
      %p90 = scmp.eq.s32.totalorder %s22, 0
      %p91 = por %p89, %p90
      %s92 = ssub.s32 %s16, %s23
      %p93 = scmp.eq.s32.totalorder %s92, 0
      %s95 = sadd.s32 %s94, 1
      %s96 = scalar_select %p93, %s94, %s95
      %p99 = pneg %p93
      %p100 = scmp.eq.s32.totalorder %s16, 1
      %p101 = por %p99, %p100
      %p102 = scmp.ne.s32.totalorder %s94, %s97
      %p103 = scmp.eq.s32.totalorder %s16, 0
      %p104 = por %p102, %p103
      %p105 = scmp.ne.s32.totalorder %s94, %s97
      %p106 = scmp.eq.s32.totalorder %s21, 1
      %p107 = por %p105, %p106
      %p108 = scmp.ne.s32.totalorder %s97, %s98
      %p109 = scmp.eq.s32.totalorder %s21, 0
      %p110 = por %p108, %p109
      %p111 = scmp.ne.s32.totalorder %s97, %s98
      %p112 = scmp.eq.s32.totalorder %s22, 1
      %p113 = por %p111, %p112
      %p115 = scmp.ne.s32.totalorder %s98, %s114
      %p116 = scmp.eq.s32.totalorder %s22, 0
      %p117 = por %p115, %p116
      %p118 = scmp.le.s32.totalorder 1, %s16
      %p119 = scmp.lt.s32.totalorder %s16, 3
      %p120 = pnand %p118, %p119
      %p121 = pneg %p120
      // Predicated region
      $region9: #{tpu_custom_call.1} parent=5 // pred_check
        _
      $region10: #{tpu_custom_call.1} parent=5 // pred_check_branch
        %123 = sbr.rel (%p120) target = $region12
      $region11: #{tpu_custom_call.1} parent=5 // pred_region
        %s124 = ssub.s32 %s16, 1
        // Predicated region
        $region13: #{tpu_custom_call.1} parent=11 // pred_check
          %p125 = pneg %p37
        $region14: #{tpu_custom_call.1} parent=11 // pred_check_branch
          %127 = sbr.rel (%p125) target = $region16
        $region15: #{tpu_custom_call.1} parent=11 // pred_region
          %s129 = ssub.s32 1152, 1152
          %130 = vsyncadd [#allocation3], %s129
          %s131 = sshll.u32 [#allocation2], 4
          %s132 = int_to_ptr.vmem [resolvable:$true] %s131
          %137 = dma.hbm_to_vmem [thread:$0]  %s0, 1152, %s132, [#allocation3], 64, 64, 4
        $region16: #{tpu_custom_call.1} parent=11 // pred_fallthru
          _
        // Predicated region
        $region17: #{tpu_custom_call.1} parent=11 // pred_check
          %p138 = pneg %p84
        $region18: #{tpu_custom_call.1} parent=11 // pred_check_branch
          %140 = sbr.rel (%p138) target = $region20
        $region19: #{tpu_custom_call.1} parent=11 // pred_region
          _
        $region20: #{tpu_custom_call.1} parent=11 // pred_fallthru
          _
      $region12: #{tpu_custom_call.1} parent=5 // pred_fallthru
        _
      %p141 = scmp.lt.s32.totalorder %s16, 2
      // Predicated region
      $region21: #{tpu_custom_call.1} parent=5 // pred_check
        %p142 = pneg %p141
      $region22: #{tpu_custom_call.1} parent=5 // pred_check_branch
        %144 = sbr.rel (%p142) target = $region24
      $region23: #{tpu_custom_call.1} parent=5 // pred_region
        // Predicated region
        $region25: #{tpu_custom_call.1} parent=23 // pred_check
          %p145 = pneg %p57
        $region26: #{tpu_custom_call.1} parent=23 // pred_check_branch
          %147 = sbr.rel (%p145) target = $region28
        $region27: #{tpu_custom_call.1} parent=23 // pred_region
          %s148 = sand.u32 %s47, 1
          %s149 = scalar_lea.sflag [#allocation6], %s148
          %s150 = sand.u32 %s47, 1
          %s151 = smul.addr %s150, 16
          %s152 = scalar_lea.vmem [#allocation5], %s151
          %s154 = ssub.s32 256, 256
          %155 = vsyncadd %s149, %s154
          %s156 = smul.addr %s16, 4
          %s157 = smul.addr %s156, 64
          %s158 = scalar_lea.hbm %s1, %s157
          %s159 = sshll.u32 %s152, 4
          %s160 = int_to_ptr.vmem [resolvable:$true] %s159
          %165 = dma.hbm_to_vmem [thread:$0]  %s158, 256, %s160, %s149, 128, 128, 8
        $region28: #{tpu_custom_call.1} parent=23 // pred_fallthru
          _
      $region24: #{tpu_custom_call.1} parent=5 // pred_fallthru
        _
      %p166 = scmp.le.s32.totalorder 1, %s16
      %p167 = scmp.lt.s32.totalorder %s16, 3
      %p168 = pnand %p166, %p167
      %p169 = pneg %p168
      // Predicated region
      $region29: #{tpu_custom_call.1} parent=5 // pred_check
        _
      $region30: #{tpu_custom_call.1} parent=5 // pred_check_branch
        %171 = sbr.rel (%p168) target = $region32
      $region31: #{tpu_custom_call.1} parent=5 // pred_region
        %s172 = ssub.s32 %s16, 1
        // Predicated region
        $region33: #{tpu_custom_call.1} parent=31 // pred_check
          %p173 = pneg %p37
        $region34: #{tpu_custom_call.1} parent=31 // pred_check_branch
          %175 = sbr.rel (%p173) target = $region36
        $region35: #{tpu_custom_call.1} parent=31 // pred_region
          %176 = dma.done [#allocation3], 1152
        $region36: #{tpu_custom_call.1} parent=31 // pred_fallthru
          _
        %s177 = sand.u32 %s50, 1
        %s178 = scalar_lea.sflag [#allocation6], %s177
        %s179 = sand.u32 %s50, 1
        %s180 = smul.addr %s179, 16
        %s181 = scalar_lea.vmem [#allocation5], %s180
        // Predicated region
        $region37: #{tpu_custom_call.1} parent=31 // pred_check
          %p182 = pneg %p63
        $region38: #{tpu_custom_call.1} parent=31 // pred_check_branch
          %184 = sbr.rel (%p182) target = $region40
        $region39: #{tpu_custom_call.1} parent=31 // pred_region
          %185 = dma.done %s178, 256
        $region40: #{tpu_custom_call.1} parent=31 // pred_fallthru
          _
        %p186 = pneg %p37
        %p187 = pneg %p34
        %s188 = sand.u32 %s50, 1
        %s189 = scalar_lea.sflag [#allocation6], %s188
        %s190 = sand.u32 %s50, 1
        %s191 = smul.addr %s190, 16
        %s192 = scalar_lea.vmem [#allocation5], %s191
        %p193 = pneg %p63
        %p194 = pneg %p60
        %p195 = pneg %p84
        %p196 = pneg %p81
        %p197 = pneg %p110
        %p198 = pneg %p107
        %s199 = sand.u32 %s97, 1
        %s200 = scalar_lea.sflag [#allocation4], %s199
        %s201 = sand.u32 %s97, 1
        %s202 = smul.addr %s201, 16
        %s203 = scalar_lea.vmem [#allocation7], %s202
        %v205 = vld [vmem:[%s181] sm:$0xf]
        %v206 = vld [vmem:[%s181 + $0x8] sm:$0xf]
        %v207 = vld [vmem:[#allocation2] sm:$0xf]
        %v208 = vld [vmem:[#allocation2 + $0x4] sm:$0xf]
        %v209 = vld [vmem:[%s181] sm:$0xff]
        %v210 = vld [vmem:[%s181 + $0x8] sm:$0xff]
        %s211 = scalar_lea.vmem [#allocation2], 8
        %v212 = vld [vmem:[%s211] sm:$0xf]
        %v213 = vld [vmem:[%s211 + $0x4] sm:$0xf]
        %v216 = vunpack.c.l.b16 %v212
        %v217 = vunpack.c.l.b16 %v213
        %v218 = vpack.c.b16 %v217, %v216
        %v221 = vunpack.c.l.b16 %v209
        %v222 = vunpack.c.h.b16 %v209
        %v223 = vunpack.c.l.b16 %v210
        %v224 = vunpack.c.h.b16 %v210
        %v225 = vpack.c.b16 %v223, %v221
        %v226 = vpack.c.b16 %v224, %v222
        %227 = vrot.lane.b32.xlu0 %v225, 127
        %v228 = vpop.permute.xlu0 %227
        %229 = vrot.lane.b32.xlu0 %v226, 127
        %v230 = vpop.permute.xlu0 %229
        %vm231 = vcmask 1039360
        %v232 = vsel %vm231, %v228, %v230
        %vm234 = vcmask 130048
        %v236 = vsel %vm234, %v218, 0
        %238 = vmatprep.subr.bf16.mxu0 0
        %239 = vmatpush1.bf16.msra.mxu0 %v232
        %240 = vmatprep.subr.bf16.mxu0 0
        %241 = vmatpush1.bf16.msra.mxu0 0
        %242 = vmatprep.subr.bf16.mxu0 0
        %243 = vmatpush1.bf16.msra.mxu0 0
        %244 = vmatprep.subr.bf16.mxu0 0
        %245 = vmatpush1.bf16.msra.mxu0 0
        %246 = vmatprep.subr.bf16.mxu0 0
        %247 = vmatpush1.bf16.msra.mxu0 0
        %248 = vmatprep.subr.bf16.mxu0 0
        %249 = vmatpush1.bf16.msra.mxu0 0
        %250 = vmatprep.subr.bf16.mxu0 0
        %251 = vmatpush1.bf16.msra.mxu0 0
        %252 = vmatprep.subr.bf16.mxu0 0
        %253 = vmatpush1.bf16.msra.mxu0 0
        %254 = vmatprep.subr.bf16.mxu0 0
        %255 = vmatpush1.bf16.msra.mxu0 0
        %256 = vmatprep.subr.bf16.mxu0 0
        %257 = vmatpush1.bf16.msra.mxu0 0
        %258 = vmatprep.subr.bf16.mxu0 0
        %259 = vmatpush1.bf16.msra.mxu0 0
        %260 = vmatprep.subr.bf16.mxu0 0
        %261 = vmatpush1.bf16.msra.mxu0 0
        %262 = vmatprep.subr.bf16.mxu0 0
        %263 = vmatpush1.bf16.msra.mxu0 0
        %264 = vmatprep.subr.bf16.mxu0 0
        %265 = vmatpush1.bf16.msra.mxu0 0
        %266 = vmatprep.subr.bf16.mxu0 0
        %267 = vmatpush1.bf16.msra.mxu0 0
        %268 = vmatprep.subr.bf16.mxu0 0
        %269 = vmatpush1.bf16.msra.mxu0 0
        %270 = vmatprep.mubr.bf16.mxu0 0
        %271 = vmatmul.mubr.bf16.gmra.mrb[0].mxu0 %v236
        %v272 = vpop.f32.mrb[0].mxu0
        %v273 = vadd.f32 0.0, %v272
        %v274 = vpop.f32.mrb[0].mxu0
        %v275 = vpop.f32.mrb[0].mxu0
        %v276 = vadd.f32 0.0, %v275
        %v277 = vpop.f32.mrb[0].mxu0
        %278 = vdwg.mxu0
        %v281 = vunpack.c.l.b16 %v207
        %v282 = vunpack.c.l.b16 %v208
        %v283 = vpack.c.b16 %v282, %v281
        %v286 = vunpack.c.l.b16 %v205
        %v287 = vunpack.c.l.b16 %v206
        %v288 = vpack.c.b16 %v287, %v286
        %v291 = vsel %vm234, %v283, 0
        %293 = vmatprep.subr.bf16.mxu0 0
        %294 = vmatpush1.bf16.msra.mxu0 %v288
        %295 = vmatprep.subr.bf16.mxu0 0
        %296 = vmatpush1.bf16.msra.mxu0 0
        %297 = vmatprep.subr.bf16.mxu0 0
        %298 = vmatpush1.bf16.msra.mxu0 0
        %299 = vmatprep.subr.bf16.mxu0 0
        %300 = vmatpush1.bf16.msra.mxu0 0
        %301 = vmatprep.subr.bf16.mxu0 0
        %302 = vmatpush1.bf16.msra.mxu0 0
        %303 = vmatprep.subr.bf16.mxu0 0
        %304 = vmatpush1.bf16.msra.mxu0 0
        %305 = vmatprep.subr.bf16.mxu0 0
        %306 = vmatpush1.bf16.msra.mxu0 0
        %307 = vmatprep.subr.bf16.mxu0 0
        %308 = vmatpush1.bf16.msra.mxu0 0
        %309 = vmatprep.subr.bf16.mxu0 0
        %310 = vmatpush1.bf16.msra.mxu0 0
        %311 = vmatprep.subr.bf16.mxu0 0
        %312 = vmatpush1.bf16.msra.mxu0 0
        %313 = vmatprep.subr.bf16.mxu0 0
        %314 = vmatpush1.bf16.msra.mxu0 0
        %315 = vmatprep.subr.bf16.mxu0 0
        %316 = vmatpush1.bf16.msra.mxu0 0
        %317 = vmatprep.subr.bf16.mxu0 0
        %318 = vmatpush1.bf16.msra.mxu0 0
        %319 = vmatprep.subr.bf16.mxu0 0
        %320 = vmatpush1.bf16.msra.mxu0 0
        %321 = vmatprep.subr.bf16.mxu0 0
        %322 = vmatpush1.bf16.msra.mxu0 0
        %323 = vmatprep.subr.bf16.mxu0 0
        %324 = vmatpush1.bf16.msra.mxu0 0
        %325 = vmatprep.mubr.bf16.mxu0 0
        %326 = vmatmul.mubr.bf16.gmra.mrb[0].mxu0 %v291
        %v327 = vpop.f32.mrb[0].mxu0
        %v328 = vadd.f32 %v273, %v327
        %v329 = vpop.f32.mrb[0].mxu0
        %v330 = vpop.f32.mrb[0].mxu0
        %v331 = vadd.f32 %v276, %v330
        %v332 = vpop.f32.mrb[0].mxu0
        %333 = vdwg.mxu0
        %s334 = scalar_lea.vmem [#allocation2], 16
        %v335 = vld [vmem:[%s334] sm:$0xf]
        %v336 = vld [vmem:[%s334 + $0x4] sm:$0xf]
        %v339 = vunpack.c.l.b16 %v335
        %v340 = vunpack.c.l.b16 %v336
        %v341 = vpack.c.b16 %v340, %v339
        %342 = vrot.lane.b32.xlu0 %v225, 126
        %v343 = vpop.permute.xlu0 %342
        %344 = vrot.lane.b32.xlu0 %v226, 126
        %v345 = vpop.permute.xlu0 %344
        %vm346 = vcmask 1031168
        %v347 = vsel %vm346, %v343, %v345
        %v350 = vsel %vm234, %v341, 0
        %352 = vmatprep.subr.bf16.mxu0 0
        %353 = vmatpush1.bf16.msra.mxu0 %v347
        %354 = vmatprep.subr.bf16.mxu0 0
        %355 = vmatpush1.bf16.msra.mxu0 0
        %356 = vmatprep.subr.bf16.mxu0 0
        %357 = vmatpush1.bf16.msra.mxu0 0
        %358 = vmatprep.subr.bf16.mxu0 0
        %359 = vmatpush1.bf16.msra.mxu0 0
        %360 = vmatprep.subr.bf16.mxu0 0
        %361 = vmatpush1.bf16.msra.mxu0 0
        %362 = vmatprep.subr.bf16.mxu0 0
        %363 = vmatpush1.bf16.msra.mxu0 0
        %364 = vmatprep.subr.bf16.mxu0 0
        %365 = vmatpush1.bf16.msra.mxu0 0
        %366 = vmatprep.subr.bf16.mxu0 0
        %367 = vmatpush1.bf16.msra.mxu0 0
        %368 = vmatprep.subr.bf16.mxu0 0
        %369 = vmatpush1.bf16.msra.mxu0 0
        %370 = vmatprep.subr.bf16.mxu0 0
        %371 = vmatpush1.bf16.msra.mxu0 0
        %372 = vmatprep.subr.bf16.mxu0 0
        %373 = vmatpush1.bf16.msra.mxu0 0
        %374 = vmatprep.subr.bf16.mxu0 0
        %375 = vmatpush1.bf16.msra.mxu0 0
        %376 = vmatprep.subr.bf16.mxu0 0
        %377 = vmatpush1.bf16.msra.mxu0 0
        %378 = vmatprep.subr.bf16.mxu0 0
        %379 = vmatpush1.bf16.msra.mxu0 0
        %380 = vmatprep.subr.bf16.mxu0 0
        %381 = vmatpush1.bf16.msra.mxu0 0
        %382 = vmatprep.subr.bf16.mxu0 0
        %383 = vmatpush1.bf16.msra.mxu0 0
        %384 = vmatprep.mubr.bf16.mxu0 0
        %385 = vmatmul.mubr.bf16.gmra.mrb[0].mxu0 %v350
        %v386 = vpop.f32.mrb[0].mxu0
        %v387 = vadd.f32 0.0, %v386
        %v388 = vpop.f32.mrb[0].mxu0
        %v389 = vpop.f32.mrb[0].mxu0
        %v390 = vadd.f32 0.0, %v389
        %v391 = vpop.f32.mrb[0].mxu0
        %392 = vdwg.mxu0
        %v393 = vadd.f32 %v328, %v387
        %v394 = vadd.f32 %v331, %v390
        %s395 = scalar_lea.vmem [#allocation2], 24
        %v396 = vld [vmem:[%s395] sm:$0xf]
        %v397 = vld [vmem:[%s395 + $0x4] sm:$0xf]
        %v400 = vunpack.c.l.b16 %v396
        %v401 = vunpack.c.l.b16 %v397
        %v402 = vpack.c.b16 %v401, %v400
        %403 = vrot.lane.b32.xlu0 %v225, 117
        %v404 = vpop.permute.xlu0 %403
        %405 = vrot.lane.b32.xlu0 %v226, 117
        %v406 = vpop.permute.xlu0 %405
        %vm407 = vcmask 957440
        %v408 = vsel %vm407, %v404, %v406
        %v411 = vsel %vm234, %v402, 0
        %413 = vmatprep.subr.bf16.mxu0 0
        %414 = vmatpush1.bf16.msra.mxu0 %v408
        %415 = vmatprep.subr.bf16.mxu0 0
        %416 = vmatpush1.bf16.msra.mxu0 0
        %417 = vmatprep.subr.bf16.mxu0 0
        %418 = vmatpush1.bf16.msra.mxu0 0
        %419 = vmatprep.subr.bf16.mxu0 0
        %420 = vmatpush1.bf16.msra.mxu0 0
        %421 = vmatprep.subr.bf16.mxu0 0
        %422 = vmatpush1.bf16.msra.mxu0 0
        %423 = vmatprep.subr.bf16.mxu0 0
        %424 = vmatpush1.bf16.msra.mxu0 0
        %425 = vmatprep.subr.bf16.mxu0 0
        %426 = vmatpush1.bf16.msra.mxu0 0
        %427 = vmatprep.subr.bf16.mxu0 0
        %428 = vmatpush1.bf16.msra.mxu0 0
        %429 = vmatprep.subr.bf16.mxu0 0
        %430 = vmatpush1.bf16.msra.mxu0 0
        %431 = vmatprep.subr.bf16.mxu0 0
        %432 = vmatpush1.bf16.msra.mxu0 0
        %433 = vmatprep.subr.bf16.mxu0 0
        %434 = vmatpush1.bf16.msra.mxu0 0
        %435 = vmatprep.subr.bf16.mxu0 0
        %436 = vmatpush1.bf16.msra.mxu0 0
        %437 = vmatprep.subr.bf16.mxu0 0
        %438 = vmatpush1.bf16.msra.mxu0 0
        %439 = vmatprep.subr.bf16.mxu0 0
        %440 = vmatpush1.bf16.msra.mxu0 0
        %441 = vmatprep.subr.bf16.mxu0 0
        %442 = vmatpush1.bf16.msra.mxu0 0
        %443 = vmatprep.subr.bf16.mxu0 0
        %444 = vmatpush1.bf16.msra.mxu0 0
        %445 = vmatprep.mubr.bf16.mxu0 0
        %446 = vmatmul.mubr.bf16.gmra.mrb[0].mxu0 %v411
        %v447 = vpop.f32.mrb[0].mxu0
        %v448 = vadd.f32 0.0, %v447
        %v449 = vpop.f32.mrb[0].mxu0
        %v450 = vpop.f32.mrb[0].mxu0
        %v451 = vadd.f32 0.0, %v450
        %v452 = vpop.f32.mrb[0].mxu0
        %453 = vdwg.mxu0
        %v454 = vadd.f32 %v393, %v448
        %v455 = vadd.f32 %v394, %v451
        %s456 = scalar_lea.vmem [#allocation2], 32
        %v457 = vld [vmem:[%s456] sm:$0xf]
        %v458 = vld [vmem:[%s456 + $0x4] sm:$0xf]
        %v461 = vunpack.c.l.b16 %v457
        %v462 = vunpack.c.l.b16 %v458
        %v463 = vpack.c.b16 %v462, %v461
        %464 = vrot.lane.b32.xlu0 %v225, 116
        %v465 = vpop.permute.xlu0 %464
        %466 = vrot.lane.b32.xlu0 %v226, 116
        %v467 = vpop.permute.xlu0 %466
        %vm468 = vcmask 949248
        %v469 = vsel %vm468, %v465, %v467
        %v472 = vsel %vm234, %v463, 0
        %474 = vmatprep.subr.bf16.mxu0 0
        %475 = vmatpush1.bf16.msra.mxu0 %v469
        %476 = vmatprep.subr.bf16.mxu0 0
        %477 = vmatpush1.bf16.msra.mxu0 0
        %478 = vmatprep.subr.bf16.mxu0 0
        %479 = vmatpush1.bf16.msra.mxu0 0
        %480 = vmatprep.subr.bf16.mxu0 0
        %481 = vmatpush1.bf16.msra.mxu0 0
        %482 = vmatprep.subr.bf16.mxu0 0
        %483 = vmatpush1.bf16.msra.mxu0 0
        %484 = vmatprep.subr.bf16.mxu0 0
        %485 = vmatpush1.bf16.msra.mxu0 0
        %486 = vmatprep.subr.bf16.mxu0 0
        %487 = vmatpush1.bf16.msra.mxu0 0
        %488 = vmatprep.subr.bf16.mxu0 0
        %489 = vmatpush1.bf16.msra.mxu0 0
        %490 = vmatprep.subr.bf16.mxu0 0
        %491 = vmatpush1.bf16.msra.mxu0 0
        %492 = vmatprep.subr.bf16.mxu0 0
        %493 = vmatpush1.bf16.msra.mxu0 0
        %494 = vmatprep.subr.bf16.mxu0 0
        %495 = vmatpush1.bf16.msra.mxu0 0
        %496 = vmatprep.subr.bf16.mxu0 0
        %497 = vmatpush1.bf16.msra.mxu0 0
        %498 = vmatprep.subr.bf16.mxu0 0
        %499 = vmatpush1.bf16.msra.mxu0 0
        %500 = vmatprep.subr.bf16.mxu0 0
        %501 = vmatpush1.bf16.msra.mxu0 0
        %502 = vmatprep.subr.bf16.mxu0 0
        %503 = vmatpush1.bf16.msra.mxu0 0
        %504 = vmatprep.subr.bf16.mxu0 0
        %505 = vmatpush1.bf16.msra.mxu0 0
        %506 = vmatprep.mubr.bf16.mxu0 0
        %507 = vmatmul.mubr.bf16.gmra.mrb[0].mxu0 %v472
        %v508 = vpop.f32.mrb[0].mxu0
        %v509 = vadd.f32 0.0, %v508
        %v510 = vpop.f32.mrb[0].mxu0
        %v511 = vpop.f32.mrb[0].mxu0
        %v512 = vadd.f32 0.0, %v511
        %v513 = vpop.f32.mrb[0].mxu0
        %514 = vdwg.mxu0
        %v515 = vadd.f32 %v454, %v509
        %v516 = vadd.f32 %v455, %v512
        %s517 = scalar_lea.vmem [#allocation2], 40
        %v518 = vld [vmem:[%s517] sm:$0xf]
        %v519 = vld [vmem:[%s517 + $0x4] sm:$0xf]
        %v522 = vunpack.c.l.b16 %v518
        %v523 = vunpack.c.l.b16 %v519
        %v524 = vpack.c.b16 %v523, %v522
        %525 = vrot.lane.b32.xlu0 %v225, 115
        %v526 = vpop.permute.xlu0 %525
        %527 = vrot.lane.b32.xlu0 %v226, 115
        %v528 = vpop.permute.xlu0 %527
        %vm529 = vcmask 941056
        %v530 = vsel %vm529, %v526, %v528
        %v533 = vsel %vm234, %v524, 0
        %535 = vmatprep.subr.bf16.mxu0 0
        %536 = vmatpush1.bf16.msra.mxu0 %v530
        %537 = vmatprep.subr.bf16.mxu0 0
        %538 = vmatpush1.bf16.msra.mxu0 0
        %539 = vmatprep.subr.bf16.mxu0 0
        %540 = vmatpush1.bf16.msra.mxu0 0
        %541 = vmatprep.subr.bf16.mxu0 0
        %542 = vmatpush1.bf16.msra.mxu0 0
        %543 = vmatprep.subr.bf16.mxu0 0
        %544 = vmatpush1.bf16.msra.mxu0 0
        %545 = vmatprep.subr.bf16.mxu0 0
        %546 = vmatpush1.bf16.msra.mxu0 0
        %547 = vmatprep.subr.bf16.mxu0 0
        %548 = vmatpush1.bf16.msra.mxu0 0
        %549 = vmatprep.subr.bf16.mxu0 0
        %550 = vmatpush1.bf16.msra.mxu0 0
        %551 = vmatprep.subr.bf16.mxu0 0
        %552 = vmatpush1.bf16.msra.mxu0 0
        %553 = vmatprep.subr.bf16.mxu0 0
        %554 = vmatpush1.bf16.msra.mxu0 0
        %555 = vmatprep.subr.bf16.mxu0 0
        %556 = vmatpush1.bf16.msra.mxu0 0
        %557 = vmatprep.subr.bf16.mxu0 0
        %558 = vmatpush1.bf16.msra.mxu0 0
        %559 = vmatprep.subr.bf16.mxu0 0
        %560 = vmatpush1.bf16.msra.mxu0 0
        %561 = vmatprep.subr.bf16.mxu0 0
        %562 = vmatpush1.bf16.msra.mxu0 0
        %563 = vmatprep.subr.bf16.mxu0 0
        %564 = vmatpush1.bf16.msra.mxu0 0
        %565 = vmatprep.subr.bf16.mxu0 0
        %566 = vmatpush1.bf16.msra.mxu0 0
        %567 = vmatprep.mubr.bf16.mxu0 0
        %568 = vmatmul.mubr.bf16.gmra.mrb[0].mxu0 %v533
        %v569 = vpop.f32.mrb[0].mxu0
        %v570 = vadd.f32 0.0, %v569
        %v571 = vpop.f32.mrb[0].mxu0
        %v572 = vpop.f32.mrb[0].mxu0
        %v573 = vadd.f32 0.0, %v572
        %v574 = vpop.f32.mrb[0].mxu0
        %575 = vdwg.mxu0
        %v576 = vadd.f32 %v515, %v570
        %v577 = vadd.f32 %v516, %v573
        %s578 = scalar_lea.vmem [#allocation2], 48
        %v579 = vld [vmem:[%s578] sm:$0xf]
        %v580 = vld [vmem:[%s578 + $0x4] sm:$0xf]
        %v583 = vunpack.c.l.b16 %v579
        %v584 = vunpack.c.l.b16 %v580
        %v585 = vpack.c.b16 %v584, %v583
        %586 = vrot.lane.b32.xlu0 %v225, 106
        %v587 = vpop.permute.xlu0 %586
        %588 = vrot.lane.b32.xlu0 %v226, 106
        %v589 = vpop.permute.xlu0 %588
        %vm590 = vcmask 867328
        %v591 = vsel %vm590, %v587, %v589
        %v594 = vsel %vm234, %v585, 0
        %596 = vmatprep.subr.bf16.mxu0 0
        %597 = vmatpush1.bf16.msra.mxu0 %v591
        %598 = vmatprep.subr.bf16.mxu0 0
        %599 = vmatpush1.bf16.msra.mxu0 0
        %600 = vmatprep.subr.bf16.mxu0 0
        %601 = vmatpush1.bf16.msra.mxu0 0
        %602 = vmatprep.subr.bf16.mxu0 0
        %603 = vmatpush1.bf16.msra.mxu0 0
        %604 = vmatprep.subr.bf16.mxu0 0
        %605 = vmatpush1.bf16.msra.mxu0 0
        %606 = vmatprep.subr.bf16.mxu0 0
        %607 = vmatpush1.bf16.msra.mxu0 0
        %608 = vmatprep.subr.bf16.mxu0 0
        %609 = vmatpush1.bf16.msra.mxu0 0
        %610 = vmatprep.subr.bf16.mxu0 0
        %611 = vmatpush1.bf16.msra.mxu0 0
        %612 = vmatprep.subr.bf16.mxu0 0
        %613 = vmatpush1.bf16.msra.mxu0 0
        %614 = vmatprep.subr.bf16.mxu0 0
        %615 = vmatpush1.bf16.msra.mxu0 0
        %616 = vmatprep.subr.bf16.mxu0 0
        %617 = vmatpush1.bf16.msra.mxu0 0
        %618 = vmatprep.subr.bf16.mxu0 0
        %619 = vmatpush1.bf16.msra.mxu0 0
        %620 = vmatprep.subr.bf16.mxu0 0
        %621 = vmatpush1.bf16.msra.mxu0 0
        %622 = vmatprep.subr.bf16.mxu0 0
        %623 = vmatpush1.bf16.msra.mxu0 0
        %624 = vmatprep.subr.bf16.mxu0 0
        %625 = vmatpush1.bf16.msra.mxu0 0
        %626 = vmatprep.subr.bf16.mxu0 0
        %627 = vmatpush1.bf16.msra.mxu0 0
        %628 = vmatprep.mubr.bf16.mxu0 0
        %629 = vmatmul.mubr.bf16.gmra.mrb[0].mxu0 %v594
        %v630 = vpop.f32.mrb[0].mxu0
        %v631 = vadd.f32 0.0, %v630
        %v632 = vpop.f32.mrb[0].mxu0
        %v633 = vpop.f32.mrb[0].mxu0
        %v634 = vadd.f32 0.0, %v633
        %v635 = vpop.f32.mrb[0].mxu0
        %636 = vdwg.mxu0
        %v637 = vadd.f32 %v576, %v631
        %v638 = vadd.f32 %v577, %v634
        %s639 = scalar_lea.vmem [#allocation2], 56
        %v640 = vld [vmem:[%s639] sm:$0xf]
        %v641 = vld [vmem:[%s639 + $0x4] sm:$0xf]
        %v644 = vunpack.c.l.b16 %v640
        %v645 = vunpack.c.l.b16 %v641
        %v646 = vpack.c.b16 %v645, %v644
        %647 = vrot.lane.b32.xlu0 %v225, 105
        %v648 = vpop.permute.xlu0 %647
        %649 = vrot.lane.b32.xlu0 %v226, 105
        %v650 = vpop.permute.xlu0 %649
        %vm651 = vcmask 859136
        %v652 = vsel %vm651, %v648, %v650
        %v655 = vsel %vm234, %v646, 0
        %657 = vmatprep.subr.bf16.mxu0 0
        %658 = vmatpush1.bf16.msra.mxu0 %v652
        %659 = vmatprep.subr.bf16.mxu0 0
        %660 = vmatpush1.bf16.msra.mxu0 0
        %661 = vmatprep.subr.bf16.mxu0 0
        %662 = vmatpush1.bf16.msra.mxu0 0
        %663 = vmatprep.subr.bf16.mxu0 0
        %664 = vmatpush1.bf16.msra.mxu0 0
        %665 = vmatprep.subr.bf16.mxu0 0
        %666 = vmatpush1.bf16.msra.mxu0 0
        %667 = vmatprep.subr.bf16.mxu0 0
        %668 = vmatpush1.bf16.msra.mxu0 0
        %669 = vmatprep.subr.bf16.mxu0 0
        %670 = vmatpush1.bf16.msra.mxu0 0
        %671 = vmatprep.subr.bf16.mxu0 0
        %672 = vmatpush1.bf16.msra.mxu0 0
        %673 = vmatprep.subr.bf16.mxu0 0
        %674 = vmatpush1.bf16.msra.mxu0 0
        %675 = vmatprep.subr.bf16.mxu0 0
        %676 = vmatpush1.bf16.msra.mxu0 0
        %677 = vmatprep.subr.bf16.mxu0 0
        %678 = vmatpush1.bf16.msra.mxu0 0
        %679 = vmatprep.subr.bf16.mxu0 0
        %680 = vmatpush1.bf16.msra.mxu0 0
        %681 = vmatprep.subr.bf16.mxu0 0
        %682 = vmatpush1.bf16.msra.mxu0 0
        %683 = vmatprep.subr.bf16.mxu0 0
        %684 = vmatpush1.bf16.msra.mxu0 0
        %685 = vmatprep.subr.bf16.mxu0 0
        %686 = vmatpush1.bf16.msra.mxu0 0
        %687 = vmatprep.subr.bf16.mxu0 0
        %688 = vmatpush1.bf16.msra.mxu0 0
        %689 = vmatprep.mubr.bf16.mxu0 0
        %690 = vmatmul.mubr.bf16.gmra.mrb[0].mxu0 %v655
        %v691 = vpop.f32.mrb[0].mxu0
        %v692 = vadd.f32 0.0, %v691
        %v693 = vpop.f32.mrb[0].mxu0
        %v694 = vpop.f32.mrb[0].mxu0
        %v695 = vadd.f32 0.0, %v694
        %v696 = vpop.f32.mrb[0].mxu0
        %697 = vdwg.mxu0
        %v698 = vadd.f32 %v637, %v692
        %v699 = vadd.f32 %v638, %v695
        %s700 = scalar_lea.vmem [#allocation2], 64
        %v701 = vld [vmem:[%s700] sm:$0xf]
        %v702 = vld [vmem:[%s700 + $0x4] sm:$0xf]
        %v705 = vunpack.c.l.b16 %v701
        %v706 = vunpack.c.l.b16 %v702
        %v707 = vpack.c.b16 %v706, %v705
        %708 = vrot.lane.b32.xlu0 %v225, 104
        %v709 = vpop.permute.xlu0 %708
        %710 = vrot.lane.b32.xlu0 %v226, 104
        %v711 = vpop.permute.xlu0 %710
        %vm712 = vcmask 850944
        %v713 = vsel %vm712, %v709, %v711
        %v716 = vsel %vm234, %v707, 0
        %718 = vmatprep.subr.bf16.mxu0 0
        %719 = vmatpush1.bf16.msra.mxu0 %v713
        %720 = vmatprep.subr.bf16.mxu0 0
        %721 = vmatpush1.bf16.msra.mxu0 0
        %722 = vmatprep.subr.bf16.mxu0 0
        %723 = vmatpush1.bf16.msra.mxu0 0
        %724 = vmatprep.subr.bf16.mxu0 0
        %725 = vmatpush1.bf16.msra.mxu0 0
        %726 = vmatprep.subr.bf16.mxu0 0
        %727 = vmatpush1.bf16.msra.mxu0 0
        %728 = vmatprep.subr.bf16.mxu0 0
        %729 = vmatpush1.bf16.msra.mxu0 0
        %730 = vmatprep.subr.bf16.mxu0 0
        %731 = vmatpush1.bf16.msra.mxu0 0
        %732 = vmatprep.subr.bf16.mxu0 0
        %733 = vmatpush1.bf16.msra.mxu0 0
        %734 = vmatprep.subr.bf16.mxu0 0
        %735 = vmatpush1.bf16.msra.mxu0 0
        %736 = vmatprep.subr.bf16.mxu0 0
        %737 = vmatpush1.bf16.msra.mxu0 0
        %738 = vmatprep.subr.bf16.mxu0 0
        %739 = vmatpush1.bf16.msra.mxu0 0
        %740 = vmatprep.subr.bf16.mxu0 0
        %741 = vmatpush1.bf16.msra.mxu0 0
        %742 = vmatprep.subr.bf16.mxu0 0
        %743 = vmatpush1.bf16.msra.mxu0 0
        %744 = vmatprep.subr.bf16.mxu0 0
        %745 = vmatpush1.bf16.msra.mxu0 0
        %746 = vmatprep.subr.bf16.mxu0 0
        %747 = vmatpush1.bf16.msra.mxu0 0
        %748 = vmatprep.subr.bf16.mxu0 0
        %749 = vmatpush1.bf16.msra.mxu0 0
        %750 = vmatprep.mubr.bf16.mxu0 0
        %751 = vmatmul.mubr.bf16.gmra.mrb[0].mxu0 %v716
        %v752 = vpop.f32.mrb[0].mxu0
        %v753 = vadd.f32 0.0, %v752
        %v754 = vpop.f32.mrb[0].mxu0
        %v755 = vpop.f32.mrb[0].mxu0
        %v756 = vadd.f32 0.0, %v755
        %v757 = vpop.f32.mrb[0].mxu0
        %758 = vdwg.mxu0
        %v759 = vadd.f32 %v698, %v753
        %v760 = vadd.f32 %v699, %v756
        %v761 = vld [vmem:[%s2] sm:$0xff]
        %v762 = vld [vmem:[%s2 + $0x8] sm:$0xff]
        %764 = vset.pattern.permute.xlu0 0
        %765 = vperm.xlu0 %764, %v761
        %v766 = vpop.permute.xlu0 %765
        %769 = vset.pattern.permute.xlu0 0
        %770 = vperm.xlu0 %769, %v762
        %v771 = vpop.permute.xlu0 %770
        %v773 = vadd.f32 %v759, %v766
        %v774 = vadd.f32 %v760, %v771
        %775 = vst [vmem:[%s203] sm:$0xff] %v773
        %776 = vst [vmem:[%s203 + $0x8] sm:$0xff] %v774
        %s777 = sand.u32 %s97, 1
        %s778 = scalar_lea.sflag [#allocation4], %s777
        %s779 = sand.u32 %s97, 1
        %s780 = smul.addr %s779, 16
        %s781 = scalar_lea.vmem [#allocation7], %s780
        // Predicated region
        $region41: #{tpu_custom_call.1} parent=31 // pred_check
          %p782 = pneg %p107
        $region42: #{tpu_custom_call.1} parent=31 // pred_check_branch
          %784 = sbr.rel (%p782) target = $region44
        $region43: #{tpu_custom_call.1} parent=31 // pred_region
          %s786 = ssub.s32 256, 256
          %787 = vsyncadd %s778, %s786
          %s788 = smul.addr %s21, 2
          %s789 = smul.addr %s788, 128
          %s790 = scalar_lea.hbm %s3, %s789
          %s791 = sshll.u32 %s781, 4
          %s792 = int_to_ptr.vmem [resolvable:$true] %s791
          %797 = dma.vmem_to_hbm [thread:$0]  %s792, 256, %s790, %s778, 128, 128, 8
        $region44: #{tpu_custom_call.1} parent=31 // pred_fallthru
          _
      $region32: #{tpu_custom_call.1} parent=5 // pred_fallthru
        _
      %p798 = scmp.le.s32.totalorder 2, %s16
      // Predicated region
      $region45: #{tpu_custom_call.1} parent=5 // pred_check
        %p799 = pneg %p798
      $region46: #{tpu_custom_call.1} parent=5 // pred_check_branch
        %801 = sbr.rel (%p799) target = $region48
      $region47: #{tpu_custom_call.1} parent=5 // pred_region
        %s802 = ssub.s32 %s16, 2
        // Predicated region
        $region49: #{tpu_custom_call.1} parent=47 // pred_check
          %p803 = pneg %p113
        $region50: #{tpu_custom_call.1} parent=47 // pred_check_branch
          %805 = sbr.rel (%p803) target = $region52
        $region51: #{tpu_custom_call.1} parent=47 // pred_region
          %s806 = sand.u32 %s98, 1
          %s807 = scalar_lea.sflag [#allocation4], %s806
          %s808 = sand.u32 %s98, 1
          %s809 = smul.addr %s808, 16
          %s810 = scalar_lea.vmem [#allocation7], %s809
          %811 = dma.done %s807, 256
        $region52: #{tpu_custom_call.1} parent=47 // pred_fallthru
          _
      $region48: #{tpu_custom_call.1} parent=5 // pred_fallthru
        _
    $region6: #{tpu_custom_call.1} parent=1 // loop_footer
      %s20 = sadd.s32 1, %s16
    $region7: #{tpu_custom_call.1} parent=1 // loop_footer_branch
      %15 = sbr.rel target = $region3
    $region8: #{tpu_custom_call.1} parent=1 // loop_exit
      _
    %812 = vsyncpa [#allocation3], 1
    %s813 = scalar_lea.sflag [#allocation3], 1
    %814 = vsyncpa %s813, 1
    %815 = vsyncpa [#allocation6], 1
    %s816 = scalar_lea.sflag [#allocation6], 1
    %817 = vsyncpa %s816, 1
    %818 = vsyncpa [#allocation4], 1
    %s819 = scalar_lea.sflag [#allocation4], 1
    %820 = vsyncpa %s819, 1

</llo_original>
